<compile_context>
chip_gen: v7x
topology: tpu7x:2x2x1
jax: 0.10.0
libtpu: 0.0.40
codegen_flags: <defaults>
</compile_context>

<pallas_src>
import jax
import jax.numpy as jnp
from jax import lax
from jax.experimental import pallas as pl
from jax.experimental.pallas import tpu as pltpu

# Hyper-parameters from the module's __init__ (plain Python floats so nothing
# is captured as a traced constant inside the kernels).
THRESH = 0.5        # base
EPSILON = 0.1       # miner epsilon
SCALE_POS = 8.0     # alpha
SCALE_NEG = 128.0   # beta

_LANE = 128
_NORM_EPS_SQ = 1e-24   # (1e-12)^2 -> matches torch.nn.functional.normalize eps
_NEG_INF = float("-inf")
_POS_INF = float("inf")


# ---------------------------------------------------------------------------
# pass 1: row-tiled L2 normalization
# ---------------------------------------------------------------------------
def _normalize_kernel(x_ref, o_ref):
    """x * rsqrt(max(sum(x^2), eps^2)) == x / max(||x||, eps)."""
    x = x_ref[...].astype(jnp.float32)
    ssq = jnp.sum(x * x, axis=-1, keepdims=True)
    o_ref[...] = x * lax.rsqrt(jnp.maximum(ssq, _NORM_EPS_SQ))


# ---------------------------------------------------------------------------
# pass 2: per-row-tile miner + loss
# ---------------------------------------------------------------------------
def _make_ms_tile_kernel(n_true, tm, n_pad, matmul_dtype):
    """Returns the kernel for one anchor-row tile.

    All closure values are Python ints / dtypes (no traced constants).
    """

    def kernel(xn_ref, lab_col_ref, lab_row_ref, out_ref):
        row_off = pl.multiple_of(pl.program_id(0) * tm, tm)

        # Resident full normalized matrix (constant block index -> DMA'd once)
        # and the LHS anchor tile sliced straight out of it (review item: do
        # not re-stream xn from HBM as a second input).
        xf = xn_ref[...].astype(matmul_dtype)                  # (n_pad, d)
        xt = xn_ref[pl.ds(row_off, tm), :].astype(matmul_dtype)  # (tm, d)

        # (tm, n_pad) cosine-similarity slab on the MXU, f32 accumulate.
        # matmul_dtype=bf16 gives ~3-4x MXU throughput on v5e/v6e but shifts
        # sim by ~1e-3 (can flip marginal miner decisions); default f32.
        sim = lax.dot_general(xt, xf, (((1,), (1,)), ((), ())),
                              preferred_element_type=jnp.float32)

        lab_t = lab_col_ref[pl.ds(row_off, tm), :]              # (tm, 1) int32
        lab_all = lab_row_ref[...]                              # (1, n_pad) int32

        # Skinny iotas only; comparisons broadcast to (tm, n_pad) vmasks
        # (review item: no full (tm, n_pad) int32 slabs).
        col_j = lax.broadcasted_iota(jnp.int32, (1, n_pad), 1)          # (1, n_pad)
        row_i = lax.broadcasted_iota(jnp.int32, (tm, 1), 0) + row_off   # (tm, 1)
        col_valid = col_j < n_true                                      # (1, n_pad)
        row_valid = row_i < n_true                                      # (tm, 1)

        same = lab_t == lab_all                                 # (tm, n_pad) bool
        not_diag = row_i != col_j                               # (tm, n_pad) bool

        pos_pair = same & not_diag & col_valid
        neg_pair = (~same) & col_valid

        # --- MultiSimilarityMiner(epsilon) ---
        max_neg = jnp.max(jnp.where(neg_pair, sim, _NEG_INF), axis=1, keepdims=True)
        min_pos = jnp.min(jnp.where(pos_pair, sim, _POS_INF), axis=1, keepdims=True)
        hard_pos = pos_pair & ((sim - EPSILON) < max_neg)
        hard_neg = neg_pair & ((sim + EPSILON) > min_pos)

        # --- MultiSimilarityLoss on mined pairs: ONE fused exp over the slab ---
        # hard_pos and hard_neg are disjoint, so a single exp of the combined,
        # per-row max-shifted argument feeds both masked row-sums.
        s = sim - THRESH
        pos_arg = (-SCALE_POS) * s
        neg_arg = SCALE_NEG * s
        m_pos = jnp.maximum(
            jnp.max(jnp.where(hard_pos, pos_arg, _NEG_INF), axis=1, keepdims=True), 0.0)
        m_neg = jnp.maximum(
            jnp.max(jnp.where(hard_neg, neg_arg, _NEG_INF), axis=1, keepdims=True), 0.0)
        x = jnp.where(hard_pos, pos_arg - m_pos,
                      jnp.where(hard_neg, neg_arg - m_neg, _NEG_INF))
        e = jnp.exp(x)                                          # single EUP pass
        pos_sum = jnp.sum(jnp.where(hard_pos, e, 0.0), axis=1, keepdims=True)
        neg_sum = jnp.sum(jnp.where(hard_neg, e, 0.0), axis=1, keepdims=True)

        # Stable log(1 + sum exp(.)); rows with no mined pairs give exactly 0
        # (m=0, sum=0 -> log(1)) matching pytorch-metric-learning.
        pos_loss = (1.0 / SCALE_POS) * (m_pos + jnp.log(jnp.exp(-m_pos) + pos_sum))
        neg_loss = (1.0 / SCALE_NEG) * (m_neg + jnp.log(jnp.exp(-m_neg) + neg_sum))

        out_ref[...] = jnp.where(row_valid, pos_loss + neg_loss, 0.0)

    return kernel


# ---------------------------------------------------------------------------
# per-generation budgeting
# ---------------------------------------------------------------------------
def _vmem_budget_bytes():
    """v5e/v6e (and v4/v5p) have 128 MiB physical VMEM -> allow ~100 MiB.
    v7x has only 64 MiB per TensorCore (each core holds its own resident RHS
    under megacore sharding) -> stay at 48 MiB and shrink the tile instead."""
    try:
        kind = jax.devices()[0].device_kind.lower()
    except Exception:
        kind = ""
    if ("v4" in kind) or ("v5" in kind) or ("v6" in kind):
        return 100 * 1024 * 1024
    return 48 * 1024 * 1024


def _pass2_vmem_estimate(tm, n_pad, d):
    # ~8 live (tm, n_pad) f32/bool-equivalent slabs (sim, s, pos_arg, neg_arg,
    # x, e, masks) + resident xn (with its pipeline buffer) + labels + output.
    return (8 * tm * n_pad + 2 * n_pad * d + 4 * n_pad + 8 * tm) * 4


def _pick_row_tile(requested, n_pad, d, budget):
    """Row tile: multiple of 8, >= 8, divides n_pad, fits the VMEM budget."""
    t = max(8, min(int(requested), n_pad))
    t -= t % 8

    def fits(tt):
        return (n_pad % tt == 0) and _pass2_vmem_estimate(tt, n_pad, d) <= budget

    while t > 8 and not fits(t):
        t = max(8, (t // 2) - ((t // 2) % 8))
    if n_pad % t:
        t = 8  # n_pad is a multiple of 128, so 8 always divides
    return t


# ---------------------------------------------------------------------------
# wrapper
# ---------------------------------------------------------------------------
def multi_similarity_loss(embeddings, labels, *, tm=None, matmul_dtype=jnp.float32):
    """embeddings: (N, D) float, labels: (N,) int -> scalar float32 loss."""
    n, d = embeddings.shape
    n_pad = pl.cdiv(n, _LANE) * _LANE

    budget = _vmem_budget_bytes()
    if tm is None:
        tm = 256 if budget >= 96 * 1024 * 1024 else 128
    tm = _pick_row_tile(tm, n_pad, d, budget)
    num_tiles = n_pad // tm

    # Pad to lane-aligned shapes; padded rows are zero, padded labels are -1;
    # padded rows/cols are masked in-kernel and the mean divides by true N.
    emb_p = jnp.zeros((n_pad, d), embeddings.dtype).at[:n].set(embeddings)
    lab = labels.astype(jnp.int32).reshape(n)
    lab_p = jnp.full((n_pad,), -1, dtype=jnp.int32).at[:n].set(lab)
    lab_col = lab_p.reshape(n_pad, 1)
    lab_row = lab_p.reshape(1, n_pad)

    # ---- pass 1: normalize once (large, independent row tile; HBM-bound) ----
    row_bytes = 16 * d  # in + f32 out, double-buffered
    tm1_cap = max(128, min(1024, (8 * 1024 * 1024) // max(row_bytes, 1)))
    tm1 = 128
    for cand in (1024, 512, 256):
        if cand <= n_pad and cand <= tm1_cap and n_pad % cand == 0:
            tm1 = cand
            break

    xn = pl.pallas_call(
        _normalize_kernel,
        out_shape=jax.ShapeDtypeStruct((n_pad, d), jnp.float32),
        grid=(n_pad // tm1,),
        in_specs=[pl.BlockSpec((tm1, d), lambda i: (i, 0))],
        out_specs=pl.BlockSpec((tm1, d), lambda i: (i, 0)),
        compiler_params=pltpu.CompilerParams(dimension_semantics=("parallel",)),
    )(emb_p)

    # ---- pass 2: miner + loss; everything resident, per-row losses out ----
    vmem_est = _pass2_vmem_estimate(tm, n_pad, d)
    vmem_limit = int(min(budget, max(2 * vmem_est, 32 * 1024 * 1024)))

    per_row = pl.pallas_call(
        _make_ms_tile_kernel(n, tm, n_pad, matmul_dtype),
        out_shape=jax.ShapeDtypeStruct((n_pad, 1), jnp.float32),
        grid=(num_tiles,),
        in_specs=[
            pl.BlockSpec((n_pad, d), lambda i: (0, 0)),   # resident normalized x
            pl.BlockSpec((n_pad, 1), lambda i: (0, 0)),   # resident labels (col)
            pl.BlockSpec((1, n_pad), lambda i: (0, 0)),   # resident labels (row)
        ],
        out_specs=pl.BlockSpec((tm, 1), lambda i: (i, 0)),
        compiler_params=pltpu.CompilerParams(
            dimension_semantics=("parallel",),
            vmem_limit_bytes=vmem_limit),
    )(xn, lab_col, lab_row)

    return jnp.sum(per_row) / jnp.float32(n)


# ---------------------------------------------------------------------------
# pure-JAX reference (identical semantics, for the self-check)
# ---------------------------------------------------------------------------
def _reference_loss(embeddings, labels):
    x = embeddings.astype(jnp.float32)
    n = x.shape[0]
    ssq = jnp.sum(x * x, axis=-1, keepdims=True)
    xn = x * lax.rsqrt(jnp.maximum(ssq, _NORM_EPS_SQ))
    sim = xn @ xn.T
    same = labels[:, None] == labels[None, :]
    eye = jnp.eye(n, dtype=bool)
    pos_pair = same & ~eye
    neg_pair = ~same
    max_neg = jnp.max(jnp.where(neg_pair, sim, -jnp.inf), axis=1, keepdims=True)
    min_pos = jnp.min(jnp.where(pos_pair, sim, jnp.inf), axis=1, keepdims=True)
    hard_pos = pos_pair & ((sim - EPSILON) < max_neg)
    hard_neg = neg_pair & ((sim + EPSILON) > min_pos)
    pos_s = jnp.sum(jnp.where(hard_pos, jnp.exp(-SCALE_POS * (sim - THRESH)), 0.0), axis=1)
    neg_s = jnp.sum(jnp.where(hard_neg, jnp.exp(SCALE_NEG * (sim - THRESH)), 0.0), axis=1)
    pos_loss = (1.0 / SCALE_POS) * jnp.log1p(pos_s)
    neg_loss = (1.0 / SCALE_NEG) * jnp.log1p(neg_s)
    return jnp.mean(pos_loss + neg_loss)


if __name__ == "__main__":
    key = jax.random.PRNGKey(0)
    k_emb, k_lab = jax.random.split(key)
    N, D, NUM_CLASSES = 16, 32, 4
    embeddings = jax.random.normal(k_emb, (N, D), dtype=jnp.float32)
    labels = jax.random.randint(k_lab, (N,), 0, NUM_CLASSES, dtype=jnp.int32)

    loss = multi_similarity_loss(embeddings, labels)
    jax.block_until_ready(loss)

    ref = _reference_loss(embeddings, labels)
    assert jnp.isfinite(loss), "loss is not finite"
    assert jnp.allclose(loss, ref, rtol=1e-5, atol=1e-5), (loss, ref)
    print("KERNEL_OK")
</pallas_src>

<mosaic_0001>
module attributes {stable_mosaic.version = 11 : i64} {
  func.func @_normalize_kernel(%arg0: i32, %arg1: memref<128x32xf32, #tpu.memory_space<vmem>>, %arg2: memref<128x32xf32, #tpu.memory_space<vmem>>) attributes {dimension_semantics = [#tpu.dimension_semantics<parallel>], iteration_bounds = array<i64: 1>, scalar_prefetch = 0 : i64, scratch_operands = 0 : i64, tpu.core_type = #tpu.core_type<tc>, window_params = [{transform_indices = @transform_0, window_bounds = array<i64: 128, 32>}, {transform_indices = @transform_1, window_bounds = array<i64: 128, 32>}]} {
    %c0 = arith.constant 0 : index
    %c0_0 = arith.constant 0 : index
    %0 = vector.load %arg1[%c0, %c0_0] : memref<128x32xf32, #tpu.memory_space<vmem>>, vector<128x32xf32>
    %1 = arith.mulf %0, %0 : vector<128x32xf32>
    %cst = arith.constant dense<0.000000e+00> : vector<128xf32>
    %2 = vector.multi_reduction <add>, %1, %cst [1] : vector<128x32xf32> to vector<128xf32>
    %3 = vector.shape_cast %2 : vector<128xf32> to vector<128x1xf32>
    %cst_1 = arith.constant 1.000000e-24 : f32
    %4 = vector.broadcast %cst_1 : f32 to vector<128x1xf32>
    %5 = arith.maximumf %3, %4 : vector<128x1xf32>
    %6 = math.rsqrt %5 : vector<128x1xf32>
    %7 = vector.broadcast %6 : vector<128x1xf32> to vector<128x32xf32>
    %8 = arith.mulf %0, %7 : vector<128x32xf32>
    %c0_2 = arith.constant 0 : index
    %c0_3 = arith.constant 0 : index
    %9 = vector.load %arg2[%c0_2, %c0_3] : memref<128x32xf32, #tpu.memory_space<vmem>>, vector<128x32xf32>
    tpu.vector_store %arg2[%c0_2, %c0_3], %8 {strides = array<i32>} : memref<128x32xf32, #tpu.memory_space<vmem>>, vector<128x32xf32>,
    return
  }
  func.func @transform_0(%arg0: i32) -> (i32, i32) {
    %c0_i32 = arith.constant 0 : i32
    %c0_i32_0 = arith.constant 0 : i32
    return %arg0, %c0_i32 : i32, i32
  }
  func.func @transform_1(%arg0: i32) -> (i32, i32) {
    %c0_i32 = arith.constant 0 : i32
    %c0_i32_0 = arith.constant 0 : i32
    return %arg0, %c0_i32 : i32, i32
  }
}

</mosaic_0001>

<llo_original>
// kernel: tpu_custom_call.1
$region0: #{tpu_custom_call.1}
  #allocation0 [shape = 'u32[]', space=smem, size = 0x4, offset = 0x4, fixed_abs, tag = 'smem constant byte address 0x4 - core index']
  #allocation1 [shape = 'u32[144,128]{1,0:T(1,128)}', space=vmem, size = 0x12000, scoped, tag = 'internal scratch']
  %s0 = inlined_call_operand.vmem [shape: f32[128,32], index: 0, kind: input, shape index: {}]
  %s1 = inlined_call_operand.vmem [shape: f32[128,32], index: 1, kind: output, shape index: {}]
  %s2 = sld [smem:[#allocation0]]
  $region14: #{tpu_custom_call.1} parent=0
    _
  %s4 = ssub.s32 1, %s2
  %s5 = scalar_select 0, %s4, %s2
  // Predicated region
  $region2: #{tpu_custom_call.1} parent=0 // pred_check
    _
  $region3: #{tpu_custom_call.1} parent=0 // pred_check_branch
    %7 = sbr.rel (0) target = $region5
  $region4: #{tpu_custom_call.1} parent=0 // pred_region
    _
  $region5: #{tpu_custom_call.1} parent=0 // pred_fallthru
    _
  %v8 = vld [vmem:[%s0] sm:$0xff]
  %v9 = vld [vmem:[%s0 + $0x8] sm:$0xff]
  %v10 = vld [vmem:[%s0 + $0x10] sm:$0xff]
  %v11 = vld [vmem:[%s0 + $0x18] sm:$0xff]
  %v12 = vld [vmem:[%s0 + $0x20] sm:$0xff]
  %v13 = vld [vmem:[%s0 + $0x28] sm:$0xff]
  %v14 = vld [vmem:[%s0 + $0x30] sm:$0xff]
  %v15 = vld [vmem:[%s0 + $0x38] sm:$0xff]
  %v16 = vld [vmem:[%s0 + $0x40] sm:$0xff]
  %v17 = vld [vmem:[%s0 + $0x48] sm:$0xff]
  %v18 = vld [vmem:[%s0 + $0x50] sm:$0xff]
  %v19 = vld [vmem:[%s0 + $0x58] sm:$0xff]
  %v20 = vld [vmem:[%s0 + $0x60] sm:$0xff]
  %v21 = vld [vmem:[%s0 + $0x68] sm:$0xff]
  %v22 = vld [vmem:[%s0 + $0x70] sm:$0xff]
  %v23 = vld [vmem:[%s0 + $0x78] sm:$0xff]
  %v24 = vmul.f32 %v8, %v8
  %v25 = vmul.f32 %v9, %v9
  %v26 = vmul.f32 %v10, %v10
  %v27 = vmul.f32 %v11, %v11
  %v28 = vmul.f32 %v12, %v12
  %v29 = vmul.f32 %v13, %v13
  %v30 = vmul.f32 %v14, %v14
  %v31 = vmul.f32 %v15, %v15
  %v32 = vmul.f32 %v16, %v16
  %v33 = vmul.f32 %v17, %v17
  %v34 = vmul.f32 %v18, %v18
  %v35 = vmul.f32 %v19, %v19
  %v36 = vmul.f32 %v20, %v20
  %v37 = vmul.f32 %v21, %v21
  %v38 = vmul.f32 %v22, %v22
  %v39 = vmul.f32 %v23, %v23
  %vm40 = vcmask 261120
  %v41 = vsel %vm40, %v24, 0.0
  %42 = vadd.xlane.f32.xlu0 %v41
  %v43 = vpop.xlane.xlu0 %42
  %v44 = vsel %vm40, %v25, 0.0
  %45 = vadd.xlane.f32.xlu0 %v44
  %v46 = vpop.xlane.xlu0 %45
  %v47 = vsel %vm40, %v26, 0.0
  %48 = vadd.xlane.f32.xlu0 %v47
  %v49 = vpop.xlane.xlu0 %48
  %v50 = vsel %vm40, %v27, 0.0
  %51 = vadd.xlane.f32.xlu0 %v50
  %v52 = vpop.xlane.xlu0 %51
  %v53 = vsel %vm40, %v28, 0.0
  %54 = vadd.xlane.f32.xlu0 %v53
  %v55 = vpop.xlane.xlu0 %54
  %v56 = vsel %vm40, %v29, 0.0
  %57 = vadd.xlane.f32.xlu0 %v56
  %v58 = vpop.xlane.xlu0 %57
  %v59 = vsel %vm40, %v30, 0.0
  %60 = vadd.xlane.f32.xlu0 %v59
  %v61 = vpop.xlane.xlu0 %60
  %v62 = vsel %vm40, %v31, 0.0
  %63 = vadd.xlane.f32.xlu0 %v62
  %v64 = vpop.xlane.xlu0 %63
  %v65 = vsel %vm40, %v32, 0.0
  %66 = vadd.xlane.f32.xlu0 %v65
  %v67 = vpop.xlane.xlu0 %66
  %v68 = vsel %vm40, %v33, 0.0
  %69 = vadd.xlane.f32.xlu0 %v68
  %v70 = vpop.xlane.xlu0 %69
  %v71 = vsel %vm40, %v34, 0.0
  %72 = vadd.xlane.f32.xlu0 %v71
  %v73 = vpop.xlane.xlu0 %72
  %v74 = vsel %vm40, %v35, 0.0
  %75 = vadd.xlane.f32.xlu0 %v74
  %v76 = vpop.xlane.xlu0 %75
  %v77 = vsel %vm40, %v36, 0.0
  %78 = vadd.xlane.f32.xlu0 %v77
  %v79 = vpop.xlane.xlu0 %78
  %v80 = vsel %vm40, %v37, 0.0
  %81 = vadd.xlane.f32.xlu0 %v80
  %v82 = vpop.xlane.xlu0 %81
  %v83 = vsel %vm40, %v38, 0.0
  %84 = vadd.xlane.f32.xlu0 %v83
  %v85 = vpop.xlane.xlu0 %84
  %v86 = vsel %vm40, %v39, 0.0
  %87 = vadd.xlane.f32.xlu0 %v86
  %v88 = vpop.xlane.xlu0 %87
  %v89 = vmax.f32 %v43, 1e-24
  %v90 = vmax.f32 %v46, 1e-24
  %v91 = vmax.f32 %v49, 1e-24
  %v92 = vmax.f32 %v52, 1e-24
  %v93 = vmax.f32 %v55, 1e-24
  %v94 = vmax.f32 %v58, 1e-24
  %v95 = vmax.f32 %v61, 1e-24
  %v96 = vmax.f32 %v64, 1e-24
  %v97 = vmax.f32 %v67, 1e-24
  %v98 = vmax.f32 %v70, 1e-24
  %v99 = vmax.f32 %v73, 1e-24
  %v100 = vmax.f32 %v76, 1e-24
  %v101 = vmax.f32 %v79, 1e-24
  %v102 = vmax.f32 %v82, 1e-24
  %v103 = vmax.f32 %v85, 1e-24
  %v104 = vmax.f32 %v88, 1e-24
  %v105 = vrsqrt.pop %v89
  %v106 = vrsqrt.pop %v90
  %v107 = vrsqrt.pop %v91
  %v108 = vrsqrt.pop %v92
  %v109 = vrsqrt.pop %v93
  %v110 = vrsqrt.pop %v94
  %v111 = vrsqrt.pop %v95
  %v112 = vrsqrt.pop %v96
  %v113 = vrsqrt.pop %v97
  %v114 = vrsqrt.pop %v98
  %v115 = vrsqrt.pop %v99
  %v116 = vrsqrt.pop %v100
  %v117 = vrsqrt.pop %v101
  %v118 = vrsqrt.pop %v102
  %v119 = vrsqrt.pop %v103
  %v120 = vrsqrt.pop %v104
  %v121 = vmul.f32 %v8, %v105
  %v122 = vmul.f32 %v9, %v106
  %v123 = vmul.f32 %v10, %v107
  %v124 = vmul.f32 %v11, %v108
  %v125 = vmul.f32 %v12, %v109
  %v126 = vmul.f32 %v13, %v110
  %v127 = vmul.f32 %v14, %v111
  %v128 = vmul.f32 %v15, %v112
  %v129 = vmul.f32 %v16, %v113
  %v130 = vmul.f32 %v17, %v114
  %v131 = vmul.f32 %v18, %v115
  %v132 = vmul.f32 %v19, %v116
  %v133 = vmul.f32 %v20, %v117
  %v134 = vmul.f32 %v21, %v118
  %v135 = vmul.f32 %v22, %v119
  %v136 = vmul.f32 %v23, %v120
  %137 = vst.msk [vmem:[%s1] sm:$0xff] %vm40, %v121
  %138 = vst.msk [vmem:[%s1 + $0x8] sm:$0xff] %vm40, %v122
  %139 = vst.msk [vmem:[%s1 + $0x10] sm:$0xff] %vm40, %v123
  %140 = vst.msk [vmem:[%s1 + $0x18] sm:$0xff] %vm40, %v124
  %141 = vst.msk [vmem:[%s1 + $0x20] sm:$0xff] %vm40, %v125
  %142 = vst.msk [vmem:[%s1 + $0x28] sm:$0xff] %vm40, %v126
  %143 = vst.msk [vmem:[%s1 + $0x30] sm:$0xff] %vm40, %v127
  %144 = vst.msk [vmem:[%s1 + $0x38] sm:$0xff] %vm40, %v128
  %145 = vst.msk [vmem:[%s1 + $0x40] sm:$0xff] %vm40, %v129
  %146 = vst.msk [vmem:[%s1 + $0x48] sm:$0xff] %vm40, %v130
  %147 = vst.msk [vmem:[%s1 + $0x50] sm:$0xff] %vm40, %v131
  %148 = vst.msk [vmem:[%s1 + $0x58] sm:$0xff] %vm40, %v132
  %149 = vst.msk [vmem:[%s1 + $0x60] sm:$0xff] %vm40, %v133
  %150 = vst.msk [vmem:[%s1 + $0x68] sm:$0xff] %vm40, %v134
  %151 = vst.msk [vmem:[%s1 + $0x70] sm:$0xff] %vm40, %v135
  %152 = vst.msk [vmem:[%s1 + $0x78] sm:$0xff] %vm40, %v136
  // Predicated region
  $region6: #{tpu_custom_call.1} parent=0 // pred_check
    _
  $region7: #{tpu_custom_call.1} parent=0 // pred_check_branch
    %154 = sbr.rel (0) target = $region9
  $region8: #{tpu_custom_call.1} parent=0 // pred_region
    _
  $region9: #{tpu_custom_call.1} parent=0 // pred_fallthru
    _
  // Predicated region
  $region10: #{tpu_custom_call.1} parent=0 // pred_check
    _
  $region11: #{tpu_custom_call.1} parent=0 // pred_check_branch
    %156 = sbr.rel (0) target = $region13
  $region12: #{tpu_custom_call.1} parent=0 // pred_region
    _
  $region13: #{tpu_custom_call.1} parent=0 // pred_fallthru
    _

</llo_original>
